<compile_context>
chip_gen: v5e
topology: v5e:2x2
jax: 0.10.0
libtpu: 0.0.40
codegen_flags: <defaults>
</compile_context>

<pallas_src>
import jax
import jax.numpy as jnp
from jax.experimental import pallas as pl
from jax.experimental.pallas import tpu as pltpu

_LANE = 128
_SUBLANE = 8


def _round_up(x, m):
    return (x + m - 1) // m * m


def _mxu_dot(a, w):
    # Cast the activation to the weight dtype (f32 default, bf16 optional on v6e);
    # accumulation is always f32.
    return jnp.dot(a.astype(w.dtype), w, preferred_element_type=jnp.float32)


def moe_forward_kernel(x_ref, w1_ref, b1_ref, w2_ref, b2_ref, we_ref, be_ref,
                       means_ref):
    """One batch tile: 3 MXU matmuls + SiLU. All operands are padded to clean
    (8,128) tiles; the fused expert output is lane-dense (last dim = 128k)."""
    x = x_ref[...]                                                  # (tb, K_pad) f32
    h1 = _mxu_dot(x, w1_ref[...]) + b1_ref[...]                     # (tb, W_pad) f32
    h1 = h1 * jax.nn.sigmoid(h1)                                    # SiLU, f32 VPU/EUP
    h2 = _mxu_dot(h1, w2_ref[...]) + b2_ref[...]                    # (tb, W_pad)
    h2 = h2 * jax.nn.sigmoid(h2)
    # fused expert heads: (tb, W_pad) @ (W_pad, N_pad) -> (tb, N_pad), N_pad % 128 == 0
    means_ref[...] = _mxu_dot(h2, we_ref[...]) + be_ref[...]


def prepare_params(params, *, weights_dtype=jnp.float32):
    """One-time weight preprocessing (call once, reuse every forward):
       - transpose torch (out,in) Linear weights to x@W layout
       - fuse the E expert heads into one (W, E*Dout) matrix
       - zero-pad K, W and E*Dout up to multiples of 128 (numerically exact)
       - optionally cast weights to bf16 (v6e MXU path); biases stay f32."""
    w1, b1 = params["w1"], params["b1"]          # (W, Din+Da), (W,)
    w2, b2 = params["w2"], params["b2"]          # (W, W), (W,)
    we, be = params["we"], params["be"]          # (E, Dout, W), (E, Dout)
    W, Din = w1.shape
    E, Dout, _ = we.shape

    K_pad = _round_up(Din, _LANE)
    W_pad = _round_up(W, _LANE)
    N_pad = _round_up(E * Dout, _LANE)

    def pad2(a, r, c):
        return jnp.zeros((r, c), a.dtype).at[:a.shape[0], :a.shape[1]].set(a)

    w1p = pad2(w1.T, K_pad, W_pad).astype(weights_dtype)
    w2p = pad2(w2.T, W_pad, W_pad).astype(weights_dtype)
    # column e*Dout + d of the fused matrix == output d of expert e  (matches stack(,1))
    we_fused = jnp.transpose(we, (2, 0, 1)).reshape(W, E * Dout)
    wep = pad2(we_fused, W_pad, N_pad).astype(weights_dtype)

    b1p = pad2(b1[None, :].astype(jnp.float32), 1, W_pad)
    b2p = pad2(b2[None, :].astype(jnp.float32), 1, W_pad)
    bep = pad2(be.reshape(1, E * Dout).astype(jnp.float32), 1, N_pad)

    return {
        "w1": w1p, "b1": b1p, "w2": w2p, "b2": b2p, "we": wep, "be": bep,
        "din": Din, "E": E, "Dout": Dout,
        "variance": jnp.asarray(params["variance"], jnp.float32),
    }


def moe_forward(state, action, prep, *, tile_b_max=256):
    """Returns (means (B,E,Dout), mixture_logits (B,E), cov_diag (Dout,))."""
    x = jnp.concatenate([state, action], axis=-1).astype(jnp.float32)
    B, Din = x.shape
    K_pad, W_pad = prep["w1"].shape
    N_pad = prep["we"].shape[1]
    E, Dout = prep["E"], prep["Dout"]

    # Batch tile: multiple of 8 sublanes, up to tile_b_max rows per grid step.
    tile_b = min(tile_b_max, _round_up(B, _SUBLANE))
    B_pad = _round_up(B, tile_b)
    x_pad = jnp.zeros((B_pad, K_pad), jnp.float32).at[:B, :Din].set(x)

    const = lambda i: (0, 0)   # weights stay VMEM-resident across the batch grid
    means_pad = pl.pallas_call(
        moe_forward_kernel,
        out_shape=jax.ShapeDtypeStruct((B_pad, N_pad), jnp.float32),
        grid_spec=pltpu.PrefetchScalarGridSpec(
            num_scalar_prefetch=0,
            grid=(B_pad // tile_b,),
            in_specs=[
                pl.BlockSpec((tile_b, K_pad), lambda i: (i, 0)),
                pl.BlockSpec((K_pad, W_pad), const),
                pl.BlockSpec((1, W_pad), const),
                pl.BlockSpec((W_pad, W_pad), const),
                pl.BlockSpec((1, W_pad), const),
                pl.BlockSpec((W_pad, N_pad), const),
                pl.BlockSpec((1, N_pad), const),
            ],
            out_specs=pl.BlockSpec((tile_b, N_pad), lambda i: (i, 0)),
        ),
        compiler_params=pltpu.CompilerParams(
            dimension_semantics=("parallel",)),   # v7x: split batch grid over 2 TCs
    )(x_pad, prep["w1"], prep["b1"], prep["w2"], prep["b2"],
      prep["we"], prep["be"])

    means = means_pad[:B, :E * Dout].reshape(B, E, Dout)   # == torch.stack(means, 1)

    # TODO(synk): torch.distributions.MixtureSameFamily / Categorical /
    # MultivariateNormal have no Pallas equivalent; return their parameters
    # (means, uniform mixture logits, isotropic covariance diagonal) instead.
    mixture_logits = jnp.zeros((B, E), jnp.float32)
    cov_diag = prep["variance"] * jnp.ones((Dout,), jnp.float32)
    return means, mixture_logits, cov_diag


def _reference_forward(state, action, params):
    """Plain-JAX reference (torch layout) for the correctness check."""
    x = jnp.concatenate([state, action], axis=-1).astype(jnp.float32)
    h1 = jax.nn.silu(x @ params["w1"].T + params["b1"])
    h2 = jax.nn.silu(h1 @ params["w2"].T + params["b2"])
    means = jnp.stack([h2 @ params["we"][e].T + params["be"][e]
                       for e in range(params["we"].shape[0])], axis=1)
    return means


def init_params(key, state_dim_in, action_dim, state_dim_out, num_experts,
                network_width, variance=1.0):
    din = state_dim_in + action_dim
    ks = jax.random.split(key, 6)
    scale = 0.1
    return {
        "w1": scale * jax.random.normal(ks[0], (network_width, din), jnp.float32),
        "b1": scale * jax.random.normal(ks[1], (network_width,), jnp.float32),
        "w2": scale * jax.random.normal(ks[2], (network_width, network_width), jnp.float32),
        "b2": scale * jax.random.normal(ks[3], (network_width,), jnp.float32),
        "we": scale * jax.random.normal(ks[4], (num_experts, state_dim_out, network_width), jnp.float32),
        "be": scale * jax.random.normal(ks[5], (num_experts, state_dim_out), jnp.float32),
        "variance": jnp.float32(variance),
    }


if __name__ == "__main__":
    state_dim_in, action_dim, state_dim_out = 12, 4, 12
    num_experts, network_width = 4, 32

    key = jax.random.PRNGKey(0)
    kp, ks, ka, ks2, ka2 = jax.random.split(key, 5)
    params = init_params(kp, state_dim_in, action_dim, state_dim_out,
                         num_experts, network_width, variance=1.0)
    prep = prepare_params(params)          # one-time: transpose + fuse + pad weights

    # Small-batch path (grid = 1 step).
    batch = 8
    state = jax.random.normal(ks, (batch, state_dim_in), jnp.float32)
    action = jax.random.normal(ka, (batch, action_dim), jnp.float32)
    means, mixture_logits, cov_diag = moe_forward(state, action, prep)
    jax.block_until_ready(means)
    ref = _reference_forward(state, action, params)
    assert means.shape == (batch, num_experts, state_dim_out)
    assert jnp.allclose(means, ref, atol=1e-4, rtol=1e-4)
    assert mixture_logits.shape == (batch, num_experts)
    assert cov_diag.shape == (state_dim_out,)

    # Larger ragged batch exercises the multi-step "parallel" grid + batch padding.
    batch2 = 300
    state2 = jax.random.normal(ks2, (batch2, state_dim_in), jnp.float32)
    action2 = jax.random.normal(ka2, (batch2, action_dim), jnp.float32)
    means2, _, _ = moe_forward(state2, action2, prep)
    jax.block_until_ready(means2)
    ref2 = _reference_forward(state2, action2, params)
    assert means2.shape == (batch2, num_experts, state_dim_out)
    assert jnp.allclose(means2, ref2, atol=1e-4, rtol=1e-4)

    print("KERNEL_OK")
</pallas_src>

<mosaic_0001>
module attributes {stable_mosaic.version = 11 : i64} {
  func.func @moe_forward_kernel(%arg0: i32, %arg1: memref<8x128xf32, #tpu.memory_space<vmem>>, %arg2: memref<128x128xf32, #tpu.memory_space<vmem>>, %arg3: memref<1x128xf32, #tpu.memory_space<vmem>>, %arg4: memref<128x128xf32, #tpu.memory_space<vmem>>, %arg5: memref<1x128xf32, #tpu.memory_space<vmem>>, %arg6: memref<128x128xf32, #tpu.memory_space<vmem>>, %arg7: memref<1x128xf32, #tpu.memory_space<vmem>>, %arg8: memref<8x128xf32, #tpu.memory_space<vmem>>) attributes {dimension_semantics = [#tpu.dimension_semantics<parallel>], iteration_bounds = array<i64: 1>, scalar_prefetch = 0 : i64, scratch_operands = 0 : i64, tpu.core_type = #tpu.core_type<tc>, window_params = [{transform_indices = @transform_0, window_bounds = array<i64: 8, 128>}, {pipeline_mode = #tpu.pipeline_mode<synchronous>, transform_indices = @transform_1, window_bounds = array<i64: 128, 128>}, {pipeline_mode = #tpu.pipeline_mode<synchronous>, transform_indices = @transform_2, window_bounds = array<i64: 1, 128>}, {pipeline_mode = #tpu.pipeline_mode<synchronous>, transform_indices = @transform_3, window_bounds = array<i64: 128, 128>}, {pipeline_mode = #tpu.pipeline_mode<synchronous>, transform_indices = @transform_4, window_bounds = array<i64: 1, 128>}, {pipeline_mode = #tpu.pipeline_mode<synchronous>, transform_indices = @transform_5, window_bounds = array<i64: 128, 128>}, {pipeline_mode = #tpu.pipeline_mode<synchronous>, transform_indices = @transform_6, window_bounds = array<i64: 1, 128>}, {transform_indices = @transform_7, window_bounds = array<i64: 8, 128>}]} {
    %c0 = arith.constant 0 : index
    %c0_0 = arith.constant 0 : index
    %0 = vector.load %arg1[%c0, %c0_0] : memref<8x128xf32, #tpu.memory_space<vmem>>, vector<8x128xf32>
    %c0_1 = arith.constant 0 : index
    %c0_2 = arith.constant 0 : index
    %1 = vector.load %arg2[%c0_1, %c0_2] : memref<128x128xf32, #tpu.memory_space<vmem>>, vector<128x128xf32>
    %cst = arith.constant dense<0.000000e+00> : vector<8x128xf32>
    %2 = tpu.matmul %0, %1, %cst {dimension_numbers = #tpu.dot_dimension_numbers<[1], [0], [0], [1], [0, 0, 1, 1], [], []>} : vector<8x128xf32>, vector<128x128xf32>, vector<8x128xf32> -> vector<8x128xf32>
    %c0_3 = arith.constant 0 : index
    %c0_4 = arith.constant 0 : index
    %3 = vector.load %arg3[%c0_3, %c0_4] : memref<1x128xf32, #tpu.memory_space<vmem>>, vector<1x128xf32>
    %4 = vector.broadcast %3 : vector<1x128xf32> to vector<8x128xf32>
    %5 = arith.addf %2, %4 : vector<8x128xf32>
    %6 = arith.negf %5 : vector<8x128xf32>
    %7 = math.exp %6 : vector<8x128xf32>
    %cst_5 = arith.constant 1.000000e+00 : f32
    %8 = vector.broadcast %cst_5 : f32 to vector<8x128xf32>
    %9 = arith.addf %8, %7 : vector<8x128xf32>
    %10 = arith.divf %8, %9 : vector<8x128xf32>
    %11 = arith.mulf %5, %10 : vector<8x128xf32>
    %c0_6 = arith.constant 0 : index
    %c0_7 = arith.constant 0 : index
    %12 = vector.load %arg4[%c0_6, %c0_7] : memref<128x128xf32, #tpu.memory_space<vmem>>, vector<128x128xf32>
    %cst_8 = arith.constant dense<0.000000e+00> : vector<8x128xf32>
    %13 = tpu.matmul %11, %12, %cst_8 {dimension_numbers = #tpu.dot_dimension_numbers<[1], [0], [0], [1], [0, 0, 1, 1], [], []>} : vector<8x128xf32>, vector<128x128xf32>, vector<8x128xf32> -> vector<8x128xf32>
    %c0_9 = arith.constant 0 : index
    %c0_10 = arith.constant 0 : index
    %14 = vector.load %arg5[%c0_9, %c0_10] : memref<1x128xf32, #tpu.memory_space<vmem>>, vector<1x128xf32>
    %15 = vector.broadcast %14 : vector<1x128xf32> to vector<8x128xf32>
    %16 = arith.addf %13, %15 : vector<8x128xf32>
    %17 = arith.negf %16 : vector<8x128xf32>
    %18 = math.exp %17 : vector<8x128xf32>
    %cst_11 = arith.constant 1.000000e+00 : f32
    %19 = vector.broadcast %cst_11 : f32 to vector<8x128xf32>
    %20 = arith.addf %19, %18 : vector<8x128xf32>
    %21 = arith.divf %19, %20 : vector<8x128xf32>
    %22 = arith.mulf %16, %21 : vector<8x128xf32>
    %c0_12 = arith.constant 0 : index
    %c0_13 = arith.constant 0 : index
    %23 = vector.load %arg6[%c0_12, %c0_13] : memref<128x128xf32, #tpu.memory_space<vmem>>, vector<128x128xf32>
    %cst_14 = arith.constant dense<0.000000e+00> : vector<8x128xf32>
    %24 = tpu.matmul %22, %23, %cst_14 {dimension_numbers = #tpu.dot_dimension_numbers<[1], [0], [0], [1], [0, 0, 1, 1], [], []>} : vector<8x128xf32>, vector<128x128xf32>, vector<8x128xf32> -> vector<8x128xf32>
    %c0_15 = arith.constant 0 : index
    %c0_16 = arith.constant 0 : index
    %25 = vector.load %arg7[%c0_15, %c0_16] : memref<1x128xf32, #tpu.memory_space<vmem>>, vector<1x128xf32>
    %26 = vector.broadcast %25 : vector<1x128xf32> to vector<8x128xf32>
    %27 = arith.addf %24, %26 : vector<8x128xf32>
    %c0_17 = arith.constant 0 : index
    %c0_18 = arith.constant 0 : index
    %28 = vector.load %arg8[%c0_17, %c0_18] : memref<8x128xf32, #tpu.memory_space<vmem>>, vector<8x128xf32>
    tpu.vector_store %arg8[%c0_17, %c0_18], %27 {strides = array<i32>} : memref<8x128xf32, #tpu.memory_space<vmem>>, vector<8x128xf32>,
    return
  }
  func.func @transform_0(%arg0: i32) -> (i32, i32) {
    %c0_i32 = arith.constant 0 : i32
    %c0_i32_0 = arith.constant 0 : i32
    return %arg0, %c0_i32 : i32, i32
  }
  func.func @transform_1(%arg0: i32) -> (i32, i32) {
    %c0_i32 = arith.constant 0 : i32
    %c0_i32_0 = arith.constant 0 : i32
    %c0_i32_1 = arith.constant 0 : i32
    return %c0_i32, %c0_i32_0 : i32, i32
  }
  func.func @transform_2(%arg0: i32) -> (i32, i32) {
    %c0_i32 = arith.constant 0 : i32
    %c0_i32_0 = arith.constant 0 : i32
    %c0_i32_1 = arith.constant 0 : i32
    return %c0_i32, %c0_i32_0 : i32, i32
  }
  func.func @transform_3(%arg0: i32) -> (i32, i32) {
    %c0_i32 = arith.constant 0 : i32
    %c0_i32_0 = arith.constant 0 : i32
    %c0_i32_1 = arith.constant 0 : i32
    return %c0_i32, %c0_i32_0 : i32, i32
  }
  func.func @transform_4(%arg0: i32) -> (i32, i32) {
    %c0_i32 = arith.constant 0 : i32
    %c0_i32_0 = arith.constant 0 : i32
    %c0_i32_1 = arith.constant 0 : i32
    return %c0_i32, %c0_i32_0 : i32, i32
  }
  func.func @transform_5(%arg0: i32) -> (i32, i32) {
    %c0_i32 = arith.constant 0 : i32
    %c0_i32_0 = arith.constant 0 : i32
    %c0_i32_1 = arith.constant 0 : i32
    return %c0_i32, %c0_i32_0 : i32, i32
  }
  func.func @transform_6(%arg0: i32) -> (i32, i32) {
    %c0_i32 = arith.constant 0 : i32
    %c0_i32_0 = arith.constant 0 : i32
    %c0_i32_1 = arith.constant 0 : i32
    return %c0_i32, %c0_i32_0 : i32, i32
  }
  func.func @transform_7(%arg0: i32) -> (i32, i32) {
    %c0_i32 = arith.constant 0 : i32
    %c0_i32_0 = arith.constant 0 : i32
    return %arg0, %c0_i32 : i32, i32
  }
}

</mosaic_0001>

<llo_original>
// kernel: tpu_custom_call.1
$region0: #{tpu_custom_call.1}
  #allocation0 [shape = 'u32[]', space=smem, size = 0x4, offset = 0x4, fixed_abs, tag = 'smem constant byte address 0x4 - core index']
  #allocation1 [shape = 'u32[72,128]{1,0:T(1,128)}', space=vmem, size = 0x9000, scoped, tag = 'internal scratch']
  %s0 = inlined_call_operand.hbm [shape: f32[8,128], index: 0, kind: input, shape index: {}]
  %s1 = inlined_call_operand.hbm [shape: f32[128,128], index: 1, kind: input, shape index: {}]
  %s2 = inlined_call_operand.vmem [shape: f32[1,128], index: 2, kind: input, shape index: {}]
  %s3 = inlined_call_operand.hbm [shape: f32[128,128], index: 3, kind: input, shape index: {}]
  %s4 = inlined_call_operand.vmem [shape: f32[1,128], index: 4, kind: input, shape index: {}]
  %s5 = inlined_call_operand.hbm [shape: f32[128,128], index: 5, kind: input, shape index: {}]
  %s6 = inlined_call_operand.vmem [shape: f32[1,128], index: 6, kind: input, shape index: {}]
  %s7 = inlined_call_operand.hbm [shape: f32[8,128], index: 7, kind: output, shape index: {}]
  %s8 = sld [smem:[#allocation0]]
  $region54: #{tpu_custom_call.1} parent=0
    _
  %s10 = ssub.s32 1, %s8
  %s11 = scalar_select 0, %s10, %s8
  $region1: #{tpu_custom_call.1} parent=0
    #allocation2 [shape = 'u8[4096]{0}', space=vmem, size = 0x1000, scoped, tag = 'input window, operand 0, single buffered']
    #allocation3 [shape = 's32[1]{0}', space=sflag, size = 0x4, scoped, tag = 'scoped memory for tpu_custom_call.1']
    #allocation4 [shape = 's32[1]{0}', space=sflag, size = 0x4, scoped, tag = 'scoped memory for tpu_custom_call.1']
    #allocation5 [shape = 'u8[65536]{0}', space=vmem, size = 0x10000, scoped, tag = 'input window, operand 1, single buffered']
    #allocation6 [shape = 's32[1]{0}', space=sflag, size = 0x4, scoped, tag = 'scoped memory for tpu_custom_call.1']
    #allocation7 [shape = 'u8[65536]{0}', space=vmem, size = 0x10000, scoped, tag = 'input window, operand 3, single buffered']
    #allocation8 [shape = 'u8[65536]{0}', space=vmem, size = 0x10000, scoped, tag = 'input window, operand 5, single buffered']
    #allocation9 [shape = 's32[1]{0}', space=sflag, size = 0x4, scoped, tag = 'scoped memory for tpu_custom_call.1']
    #allocation10 [shape = 'u8[4096]{0}', space=vmem, size = 0x1000, scoped, tag = 'output window, operand 0, single buffered']
    %12 = vsyncpa [#allocation3], 0
    %13 = vsyncpa [#allocation6], 0
    %14 = vsyncpa [#allocation9], 0
    %15 = vsyncpa [#allocation4], 0
    // Predicated region
    $region2: #{tpu_custom_call.1} parent=1 // pred_check
      _
    $region3: #{tpu_custom_call.1} parent=1 // pred_check_branch
      %17 = sbr.rel (0) target = $region5
    $region4: #{tpu_custom_call.1} parent=1 // pred_region
      %19 = vsyncadd [#allocation3], 0
      %s21 = sshll.u32 %s0, 4
      %s22 = int_to_ptr.hbm [resolvable:$true] %s21
      %s23 = sshll.u32 [#allocation2], 4
      %s24 = int_to_ptr.vmem [resolvable:$true] %s23
      %26 = dma.hbm_to_vmem [thread:$0]  %s22, 128, %s24, [#allocation3]
    $region5: #{tpu_custom_call.1} parent=1 // pred_fallthru
      _
    // Predicated region
    $region6: #{tpu_custom_call.1} parent=1 // pred_check
      _
    $region7: #{tpu_custom_call.1} parent=1 // pred_check_branch
      %28 = sbr.rel (0) target = $region9
    $region8: #{tpu_custom_call.1} parent=1 // pred_region
      %30 = vsyncadd [#allocation6], 0
      %s31 = sshll.u32 %s1, 4
      %s32 = int_to_ptr.hbm [resolvable:$true] %s31
      %s33 = sshll.u32 [#allocation5], 4
      %s34 = int_to_ptr.vmem [resolvable:$true] %s33
      %39 = dma.hbm_to_vmem [thread:$0]  %s32, 2048, %s34, [#allocation6], 128, 128, 8
    $region9: #{tpu_custom_call.1} parent=1 // pred_fallthru
      _
    // Predicated region
    $region10: #{tpu_custom_call.1} parent=1 // pred_check
      _
    $region11: #{tpu_custom_call.1} parent=1 // pred_check_branch
      %41 = sbr.rel (0) target = $region13
    $region12: #{tpu_custom_call.1} parent=1 // pred_region
      _
    $region13: #{tpu_custom_call.1} parent=1 // pred_fallthru
      _
    // Predicated region
    $region14: #{tpu_custom_call.1} parent=1 // pred_check
      _
    $region15: #{tpu_custom_call.1} parent=1 // pred_check_branch
      %43 = sbr.rel (0) target = $region17
    $region16: #{tpu_custom_call.1} parent=1 // pred_region
      %45 = vsyncadd [#allocation6], 0
      %s46 = sshll.u32 %s3, 4
      %s47 = int_to_ptr.hbm [resolvable:$true] %s46
      %s48 = sshll.u32 [#allocation7], 4
      %s49 = int_to_ptr.vmem [resolvable:$true] %s48
      %54 = dma.hbm_to_vmem [thread:$0]  %s47, 2048, %s49, [#allocation6], 128, 128, 8
    $region17: #{tpu_custom_call.1} parent=1 // pred_fallthru
      _
    // Predicated region
    $region18: #{tpu_custom_call.1} parent=1 // pred_check
      _
    $region19: #{tpu_custom_call.1} parent=1 // pred_check_branch
      %56 = sbr.rel (0) target = $region21
    $region20: #{tpu_custom_call.1} parent=1 // pred_region
      _
    $region21: #{tpu_custom_call.1} parent=1 // pred_fallthru
      _
    // Predicated region
    $region22: #{tpu_custom_call.1} parent=1 // pred_check
      _
    $region23: #{tpu_custom_call.1} parent=1 // pred_check_branch
      %58 = sbr.rel (0) target = $region25
    $region24: #{tpu_custom_call.1} parent=1 // pred_region
      %60 = vsyncadd [#allocation9], 0
      %s61 = sshll.u32 %s5, 4
      %s62 = int_to_ptr.hbm [resolvable:$true] %s61
      %s63 = sshll.u32 [#allocation8], 4
      %s64 = int_to_ptr.vmem [resolvable:$true] %s63
      %69 = dma.hbm_to_vmem [thread:$0]  %s62, 2048, %s64, [#allocation9], 128, 128, 8
    $region25: #{tpu_custom_call.1} parent=1 // pred_fallthru
      _
    // Predicated region
    $region26: #{tpu_custom_call.1} parent=1 // pred_check
      _
    $region27: #{tpu_custom_call.1} parent=1 // pred_check_branch
      %71 = sbr.rel (0) target = $region29
    $region28: #{tpu_custom_call.1} parent=1 // pred_region
      _
    $region29: #{tpu_custom_call.1} parent=1 // pred_fallthru
      _
    // Predicated region
    $region30: #{tpu_custom_call.1} parent=1 // pred_check
      _
    $region31: #{tpu_custom_call.1} parent=1 // pred_check_branch
      %73 = sbr.rel (0) target = $region33
    $region32: #{tpu_custom_call.1} parent=1 // pred_region
      %75 = dma.done [#allocation3], 128
    $region33: #{tpu_custom_call.1} parent=1 // pred_fallthru
      _
    // Predicated region
    $region34: #{tpu_custom_call.1} parent=1 // pred_check
      _
    $region35: #{tpu_custom_call.1} parent=1 // pred_check_branch
      %77 = sbr.rel (0) target = $region37
    $region36: #{tpu_custom_call.1} parent=1 // pred_region
      %79 = dma.done [#allocation6], 2048
    $region37: #{tpu_custom_call.1} parent=1 // pred_fallthru
      _
    // Predicated region
    $region38: #{tpu_custom_call.1} parent=1 // pred_check
      _
    $region39: #{tpu_custom_call.1} parent=1 // pred_check_branch
      %81 = sbr.rel (0) target = $region41
    $region40: #{tpu_custom_call.1} parent=1 // pred_region
      %83 = dma.done [#allocation6], 2048
    $region41: #{tpu_custom_call.1} parent=1 // pred_fallthru
      _
    // Predicated region
    $region42: #{tpu_custom_call.1} parent=1 // pred_check
      _
    $region43: #{tpu_custom_call.1} parent=1 // pred_check_branch
      %85 = sbr.rel (0) target = $region45
    $region44: #{tpu_custom_call.1} parent=1 // pred_region
      %87 = dma.done [#allocation9], 2048
    $region45: #{tpu_custom_call.1} parent=1 // pred_fallthru
      _
    %v88 = vld [vmem:[#allocation2] sm:$0xff]
    %v89 = vld [vmem:[#allocation5] sm:$0xff]
    %v90 = vld [vmem:[#allocation5 + $0x8] sm:$0xff]
    %v91 = vld [vmem:[#allocation5 + $0x10] sm:$0xff]
    %v92 = vld [vmem:[#allocation5 + $0x18] sm:$0xff]
    %v93 = vld [vmem:[#allocation5 + $0x20] sm:$0xff]
    %v94 = vld [vmem:[#allocation5 + $0x28] sm:$0xff]
    %v95 = vld [vmem:[#allocation5 + $0x30] sm:$0xff]
    %v96 = vld [vmem:[#allocation5 + $0x38] sm:$0xff]
    %v97 = vld [vmem:[#allocation5 + $0x40] sm:$0xff]
    %v98 = vld [vmem:[#allocation5 + $0x48] sm:$0xff]
    %v99 = vld [vmem:[#allocation5 + $0x50] sm:$0xff]
    %v100 = vld [vmem:[#allocation5 + $0x58] sm:$0xff]
    %v101 = vld [vmem:[#allocation5 + $0x60] sm:$0xff]
    %v102 = vld [vmem:[#allocation5 + $0x68] sm:$0xff]
    %v103 = vld [vmem:[#allocation5 + $0x70] sm:$0xff]
    %v104 = vld [vmem:[#allocation5 + $0x78] sm:$0xff]
    %v105 = vld [vmem:[%s2] sm:$0x1]
    %v107 = vperm.slane %v105, 0
    %109 = vmatpush.msra.mxu0 %v104
    %110 = vmatpush.msra.mxu0 %v103
    %111 = vmatpush.msra.mxu0 %v102
    %112 = vmatpush.msra.mxu0 %v101
    %113 = vmatpush.msra.mxu0 %v100
    %114 = vmatpush.msra.mxu0 %v99
    %115 = vmatpush.msra.mxu0 %v98
    %116 = vmatpush.msra.mxu0 %v97
    %117 = vmatpush.msra.mxu0 %v96
    %118 = vmatpush.msra.mxu0 %v95
    %119 = vmatpush.msra.mxu0 %v94
    %120 = vmatpush.msra.mxu0 %v93
    %121 = vmatpush.msra.mxu0 %v92
    %122 = vmatpush.msra.mxu0 %v91
    %123 = vmatpush.msra.mxu0 %v90
    %124 = vmatpush.msra.mxu0 %v89
    %125 = vmatmul.f32.gmra.mxu0 %v88
    %v126 = vpop.f32.mrf.mxu0
    %v127 = vadd.f32 %v107, %v126
    %128 = vdwg.mxu0
    %v129 = vxor.u32 %v127, 2147483648
    %v130 = vmul.f32 %v129, 1.442695
    %v131 = vpow.pop %v130
    %v132 = vadd.f32 %v131, 1.0
    %v133 = vrcp.pop %v132
    %v134 = vmul.f32 %v132, %v133
    %v135 = vsub.f32 1.0, %v134
    %v136 = vmul.f32 %v133, %v135
    %v137 = vadd.f32 %v133, %v136
    %vm138 = vweird.f32 %v132
    %vm139 = vweird.f32 %v133
    %vm140 = vmor %vm138, %vm139
    %v141 = vsel %vm140, %v133, %v137
    %v142 = vand.u32 2147483647, %v132
    %vm143 = vcmp.eq.f32.partialorder %v142, 8.507059e+37
    %v144 = vand.u32 %v132, 2147483648
    %v145 = vor.u32 1.1754944e-38, %v144
    %v146 = vsel %vm143, %v145, %v141
    %v147 = vmul.f32 1.0, %v146
    %v148 = vmul.f32 %v127, %v147
    %v149 = vld [vmem:[#allocation7] sm:$0xff]
    %v150 = vld [vmem:[#allocation7 + $0x8] sm:$0xff]
    %v151 = vld [vmem:[#allocation7 + $0x10] sm:$0xff]
    %v152 = vld [vmem:[#allocation7 + $0x18] sm:$0xff]
    %v153 = vld [vmem:[#allocation7 + $0x20] sm:$0xff]
    %v154 = vld [vmem:[#allocation7 + $0x28] sm:$0xff]
    %v155 = vld [vmem:[#allocation7 + $0x30] sm:$0xff]
    %v156 = vld [vmem:[#allocation7 + $0x38] sm:$0xff]
    %v157 = vld [vmem:[#allocation7 + $0x40] sm:$0xff]
    %v158 = vld [vmem:[#allocation7 + $0x48] sm:$0xff]
    %v159 = vld [vmem:[#allocation7 + $0x50] sm:$0xff]
    %v160 = vld [vmem:[#allocation7 + $0x58] sm:$0xff]
    %v161 = vld [vmem:[#allocation7 + $0x60] sm:$0xff]
    %v162 = vld [vmem:[#allocation7 + $0x68] sm:$0xff]
    %v163 = vld [vmem:[#allocation7 + $0x70] sm:$0xff]
    %v164 = vld [vmem:[#allocation7 + $0x78] sm:$0xff]
    %v165 = vld [vmem:[%s4] sm:$0x1]
    %v167 = vperm.slane %v165, 0
    %169 = vmatpush.msra.mxu0 %v164
    %170 = vmatpush.msra.mxu0 %v163
    %171 = vmatpush.msra.mxu0 %v162
    %172 = vmatpush.msra.mxu0 %v161
    %173 = vmatpush.msra.mxu0 %v160
    %174 = vmatpush.msra.mxu0 %v159
    %175 = vmatpush.msra.mxu0 %v158
    %176 = vmatpush.msra.mxu0 %v157
    %177 = vmatpush.msra.mxu0 %v156
    %178 = vmatpush.msra.mxu0 %v155
    %179 = vmatpush.msra.mxu0 %v154
    %180 = vmatpush.msra.mxu0 %v153
    %181 = vmatpush.msra.mxu0 %v152
    %182 = vmatpush.msra.mxu0 %v151
    %183 = vmatpush.msra.mxu0 %v150
    %184 = vmatpush.msra.mxu0 %v149
    %185 = vmatmul.f32.gmra.mxu0 %v148
    %v186 = vpop.f32.mrf.mxu0
    %v187 = vadd.f32 %v167, %v186
    %188 = vdwg.mxu0
    %v189 = vxor.u32 %v187, 2147483648
    %v190 = vmul.f32 %v189, 1.442695
    %v191 = vpow.pop %v190
    %v192 = vadd.f32 %v191, 1.0
    %v193 = vrcp.pop %v192
    %v194 = vmul.f32 %v192, %v193
    %v195 = vsub.f32 1.0, %v194
    %v196 = vmul.f32 %v193, %v195
    %v197 = vadd.f32 %v193, %v196
    %vm198 = vweird.f32 %v192
    %vm199 = vweird.f32 %v193
    %vm200 = vmor %vm198, %vm199
    %v201 = vsel %vm200, %v193, %v197
    %v202 = vand.u32 2147483647, %v192
    %vm203 = vcmp.eq.f32.partialorder %v202, 8.507059e+37
    %v204 = vand.u32 %v192, 2147483648
    %v205 = vor.u32 1.1754944e-38, %v204
    %v206 = vsel %vm203, %v205, %v201
    %v207 = vmul.f32 1.0, %v206
    %v208 = vmul.f32 %v187, %v207
    %v209 = vld [vmem:[#allocation8] sm:$0xff]
    %v210 = vld [vmem:[#allocation8 + $0x8] sm:$0xff]
    %v211 = vld [vmem:[#allocation8 + $0x10] sm:$0xff]
    %v212 = vld [vmem:[#allocation8 + $0x18] sm:$0xff]
    %v213 = vld [vmem:[#allocation8 + $0x20] sm:$0xff]
    %v214 = vld [vmem:[#allocation8 + $0x28] sm:$0xff]
    %v215 = vld [vmem:[#allocation8 + $0x30] sm:$0xff]
    %v216 = vld [vmem:[#allocation8 + $0x38] sm:$0xff]
    %v217 = vld [vmem:[#allocation8 + $0x40] sm:$0xff]
    %v218 = vld [vmem:[#allocation8 + $0x48] sm:$0xff]
    %v219 = vld [vmem:[#allocation8 + $0x50] sm:$0xff]
    %v220 = vld [vmem:[#allocation8 + $0x58] sm:$0xff]
    %v221 = vld [vmem:[#allocation8 + $0x60] sm:$0xff]
    %v222 = vld [vmem:[#allocation8 + $0x68] sm:$0xff]
    %v223 = vld [vmem:[#allocation8 + $0x70] sm:$0xff]
    %v224 = vld [vmem:[#allocation8 + $0x78] sm:$0xff]
    %v225 = vld [vmem:[%s6] sm:$0x1]
    %v227 = vperm.slane %v225, 0
    %229 = vmatpush.msra.mxu0 %v224
    %230 = vmatpush.msra.mxu0 %v223
    %231 = vmatpush.msra.mxu0 %v222
    %232 = vmatpush.msra.mxu0 %v221
    %233 = vmatpush.msra.mxu0 %v220
    %234 = vmatpush.msra.mxu0 %v219
    %235 = vmatpush.msra.mxu0 %v218
    %236 = vmatpush.msra.mxu0 %v217
    %237 = vmatpush.msra.mxu0 %v216
    %238 = vmatpush.msra.mxu0 %v215
    %239 = vmatpush.msra.mxu0 %v214
    %240 = vmatpush.msra.mxu0 %v213
    %241 = vmatpush.msra.mxu0 %v212
    %242 = vmatpush.msra.mxu0 %v211
    %243 = vmatpush.msra.mxu0 %v210
    %244 = vmatpush.msra.mxu0 %v209
    %245 = vmatmul.f32.gmra.mxu0 %v208
    %v246 = vpop.f32.mrf.mxu0
    %v247 = vadd.f32 %v227, %v246
    %248 = vdwg.mxu0
    %249 = vst [vmem:[#allocation10] sm:$0xff] %v247
    // Predicated region
    $region46: #{tpu_custom_call.1} parent=1 // pred_check
      _
    $region47: #{tpu_custom_call.1} parent=1 // pred_check_branch
      %251 = sbr.rel (0) target = $region49
    $region48: #{tpu_custom_call.1} parent=1 // pred_region
      %253 = vsyncadd [#allocation4], 0
      %s255 = sshll.u32 [#allocation10], 4
      %s256 = int_to_ptr.vmem [resolvable:$true] %s255
      %s257 = sshll.u32 %s7, 4
      %s258 = int_to_ptr.hbm [resolvable:$true] %s257
      %260 = dma.vmem_to_hbm [thread:$0]  %s256, 128, %s258, [#allocation4]
    $region49: #{tpu_custom_call.1} parent=1 // pred_fallthru
      _
    // Predicated region
    $region50: #{tpu_custom_call.1} parent=1 // pred_check
      _
    $region51: #{tpu_custom_call.1} parent=1 // pred_check_branch
      %262 = sbr.rel (0) target = $region53
    $region52: #{tpu_custom_call.1} parent=1 // pred_region
      %264 = dma.done [#allocation4], 128
    $region53: #{tpu_custom_call.1} parent=1 // pred_fallthru
      _
    %265 = vsyncpa [#allocation3], 1
    %266 = vsyncpa [#allocation6], 1
    %267 = vsyncpa [#allocation9], 1
    %268 = vsyncpa [#allocation4], 1

</llo_original>
